<compile_context>
chip_gen: v5e
topology: v5e:2x2
jax: 0.10.0
libtpu: 0.0.40
codegen_flags: <defaults>
</compile_context>

<pallas_src>
import math
import functools

import jax
import jax.numpy as jnp
from jax import lax
from jax.experimental import pallas as pl
from jax.experimental.pallas import tpu as pltpu


# --------------------------------------------------------------------------
# Kernels
# --------------------------------------------------------------------------
def _token_embedding_onehot_kernel(ids_ref, table_ref, o_ref, *, scale, vocab):
    """Small-vocab fast path: gather via one-hot matmul on the MXU.

    ids_ref   : VMEM (tt, 1) int32      -- token ids for this block
    table_ref : VMEM (vocab, emb_p)     -- whole table, single-buffered
    o_ref     : VMEM (tt, emb_p)        -- lane-dense output tile
    """
    # Clamp guards against OOB reads (PyTorch would raise instead).
    ids = jnp.clip(ids_ref[...], 0, vocab - 1)                      # (tt, 1)
    tt = o_ref.shape[0]
    iota = lax.broadcasted_iota(jnp.int32, (tt, vocab), 1)          # (tt, vocab)
    onehot = (iota == ids).astype(table_ref.dtype)                  # (tt, vocab)
    acc = jnp.dot(onehot, table_ref[...],
                  preferred_element_type=jnp.float32)               # (tt, emb_p)
    # One scale multiply per tile (not per row).
    o_ref[...] = (acc * jnp.float32(scale)).astype(o_ref.dtype)


def _token_embedding_gather_kernel(ids_ref, table_ref, o_ref, *, scale,
                                   tokens_per_block, vocab, group):
    """Large-vocab fallback: batched sublane-group gather from the VMEM table.

    ids_ref   : SMEM (n_pad,) int32     -- scalar-prefetched, full array
    table_ref : VMEM (vocab, emb_p)     -- whole table, single-buffered
    o_ref     : VMEM (tokens_per_block, emb_p)
    """
    base = pl.program_id(0) * tokens_per_block
    scale_f32 = jnp.float32(scale)

    def body(g, carry):
        start = pl.multiple_of(g * group, group)
        # `group` independent row gathers (unrolled) -> one full-vreg tile.
        rows = [
            table_ref[pl.ds(jnp.clip(ids_ref[base + start + r], 0, vocab - 1), 1), :]
            for r in range(group)
        ]
        tile = jnp.concatenate(rows, axis=0).astype(jnp.float32)    # (group, emb_p)
        # One scale multiply and ONE store per group (no per-row masked stores).
        o_ref[pl.ds(start, group), :] = (tile * scale_f32).astype(o_ref.dtype)
        return carry

    lax.fori_loop(0, tokens_per_block // group, body, 0, unroll=False)


# --------------------------------------------------------------------------
# Wrapper
# --------------------------------------------------------------------------
def _generation_aware_vmem_limit() -> int:
    """Pick a VMEM limit with headroom for the current TPU generation."""
    default = 64 * 1024 * 1024
    try:
        cap = int(pltpu.get_tpu_info().vmem_capacity_bytes)
    except Exception:
        return default
    # ~16 MiB headroom for compiler scratch / output double buffers;
    # cap at ~100 MiB on 128 MiB parts (v5e/v6e), ~48 MiB usable on v7x.
    return max(32 * 1024 * 1024, min(cap - 16 * 1024 * 1024, 100 * 1024 * 1024))


def token_embedding(tokens: jnp.ndarray,
                    embedding_table: jnp.ndarray,
                    *,
                    tokens_per_block: int = 1024,
                    onehot_vocab_limit: int = 4096,
                    vmem_limit_bytes: int | None = None) -> jnp.ndarray:
    """Pallas equivalent of TokenEmbedding.forward: table[tokens] * sqrt(emb)."""
    vocab, emb = embedding_table.shape
    scale = math.sqrt(emb)
    out_dtype = embedding_table.dtype

    lead_shape = tokens.shape
    ids = tokens.reshape(-1).astype(jnp.int32)   # torch .long() -> int32 indices
    n = ids.shape[0]

    # Lane-dense output: pad emb up to a multiple of 128 (sliced off at the end).
    emb_p = ((emb + 127) // 128) * 128
    table = embedding_table
    if emb_p != emb:
        table = jnp.pad(table, ((0, 0), (0, emb_p - emb)))

    itemsize = jnp.dtype(out_dtype).itemsize
    group = {4: 8, 2: 16, 1: 32}.get(itemsize, 8)       # full-vreg sublane group

    use_onehot = vocab <= onehot_vocab_limit
    if use_onehot:
        # Keep the (tt, vocab) one-hot intermediate modest (<= ~4 MiB of f32).
        max_tt = max(group, (4 * 1024 * 1024) // (vocab * 4))
        tpb = min(tokens_per_block, max_tt)
    else:
        tpb = tokens_per_block

    # Round the token block to the sublane group; pad ids so the grid divides.
    tt = min(tpb, pl.cdiv(n, group) * group)
    tt = max(group, (tt // group) * group)
    n_pad = pl.cdiv(n, tt) * tt
    if n_pad != n:
        ids = jnp.pad(ids, (0, n_pad - n))
    n_blocks = n_pad // tt

    if vmem_limit_bytes is None:
        vmem_limit_bytes = _generation_aware_vmem_limit()

    # "parallel" shards token tiles across v7x's two TensorCores, but each core
    # then stages its own copy of the resident table — only worth it when the
    # output written is at least as large as the table (neutral on v5e/v6e).
    table_bytes = vocab * emb_p * itemsize
    out_bytes = n_pad * emb_p * itemsize
    dims = ("parallel",) if (n_blocks > 1 and out_bytes >= table_bytes) else ("arbitrary",)

    compiler_params = pltpu.CompilerParams(
        dimension_semantics=dims, vmem_limit_bytes=vmem_limit_bytes)
    out_shape = jax.ShapeDtypeStruct((n_pad, emb_p), out_dtype)

    # TODO(synk): for vocab tables too large for usable VMEM (or when only a few
    # rows are touched), keep the table in HBM (memory_space=pl.ANY) and do a
    # per-row make_async_copy DMA gather with several in-flight copies.
    if use_onehot:
        kernel = functools.partial(_token_embedding_onehot_kernel,
                                   scale=scale, vocab=vocab)
        out = pl.pallas_call(
            kernel,
            out_shape=out_shape,
            grid=(n_blocks,),
            in_specs=[
                pl.BlockSpec((tt, 1), lambda i: (i, 0)),               # token ids
                pl.BlockSpec(memory_space=pltpu.MemorySpace.VMEM),     # whole table, 1 buffer
            ],
            out_specs=pl.BlockSpec((tt, emb_p), lambda i: (i, 0)),
            compiler_params=compiler_params,
        )(ids.reshape(n_pad, 1), table)
    else:
        kernel = functools.partial(_token_embedding_gather_kernel,
                                   scale=scale, tokens_per_block=tt,
                                   vocab=vocab, group=group)
        out = pl.pallas_call(
            kernel,
            out_shape=out_shape,
            grid_spec=pltpu.PrefetchScalarGridSpec(
                num_scalar_prefetch=1,                                 # ids -> SMEM
                grid=(n_blocks,),
                in_specs=[pl.BlockSpec(memory_space=pltpu.MemorySpace.VMEM)],
                out_specs=pl.BlockSpec((tt, emb_p), lambda i, ids_ref: (i, 0)),
            ),
            compiler_params=compiler_params,
        )(ids, table)

    return out[:n, :emb].reshape(*lead_shape, emb)


# --------------------------------------------------------------------------
# Demo / self-check
# --------------------------------------------------------------------------
if __name__ == "__main__":
    # Small shapes consistent with the module's forward: tokens are (seq, batch)
    # integer ids; emb_size is a multiple of 128 for lane-dense stores.
    vocab_size, emb_size = 512, 128
    seq_len, batch = 8, 2

    key = jax.random.PRNGKey(0)
    k_tok, k_emb = jax.random.split(key)
    tokens = jax.random.randint(k_tok, (seq_len, batch), 0, vocab_size, dtype=jnp.int32)
    table = jax.random.normal(k_emb, (vocab_size, emb_size), dtype=jnp.float32)

    ref = table[tokens] * math.sqrt(emb_size)

    # Fast path: one-hot MXU matmul (default for this small vocab).
    out = jax.block_until_ready(token_embedding(tokens, table))
    assert out.shape == (seq_len, batch, emb_size)
    assert out.dtype == table.dtype
    assert jnp.allclose(out, ref, atol=1e-5, rtol=1e-5)

    # Fallback path: batched sublane-group gather (forced by disabling one-hot).
    out_gather = jax.block_until_ready(
        token_embedding(tokens, table, onehot_vocab_limit=0))
    assert out_gather.shape == (seq_len, batch, emb_size)
    assert jnp.allclose(out_gather, ref, atol=1e-5, rtol=1e-5)

    print("KERNEL_OK")
</pallas_src>

<mosaic_0001>
module attributes {stable_mosaic.version = 11 : i64} {
  func.func @_token_embedding_onehot_kernel(%arg0: i32, %arg1: memref<16x1xi32, #tpu.memory_space<vmem>>, %arg2: memref<512x128xf32, #tpu.memory_space<vmem>>, %arg3: memref<16x128xf32, #tpu.memory_space<vmem>>) attributes {dimension_semantics = [#tpu.dimension_semantics<arbitrary>], iteration_bounds = array<i64: 1>, scalar_prefetch = 0 : i64, scratch_operands = 0 : i64, tpu.core_type = #tpu.core_type<tc>, window_params = [{transform_indices = @transform_0, window_bounds = array<i64: 16, 1>}, {pipeline_mode = #tpu.pipeline_mode<synchronous>, transform_indices = @transform_1, window_bounds = array<i64: 512, 128>}, {transform_indices = @transform_2, window_bounds = array<i64: 16, 128>}]} {
    %c0 = arith.constant 0 : index
    %c0_0 = arith.constant 0 : index
    %0 = vector.load %arg1[%c0, %c0_0] : memref<16x1xi32, #tpu.memory_space<vmem>>, vector<16x1xi32>
    %c0_i32 = arith.constant 0 : i32
    %c511_i32 = arith.constant 511 : i32
    %1 = vector.broadcast %c0_i32 : i32 to vector<16x1xi32>
    %2 = arith.maxsi %1, %0 : vector<16x1xi32>
    %3 = vector.broadcast %c511_i32 : i32 to vector<16x1xi32>
    %4 = arith.minsi %3, %2 : vector<16x1xi32>
    %5 = tpu.iota {dimensions = array<i32: 1>} : vector<16x512xi32>
    %6 = vector.broadcast %4 : vector<16x1xi32> to vector<16x512xi32>
    %7 = arith.cmpi eq, %5, %6 : vector<16x512xi32>
    %8 = arith.extui %7 : vector<16x512xi1> to vector<16x512xi32>
    %9 = arith.sitofp %8 : vector<16x512xi32> to vector<16x512xf32>
    %c0_1 = arith.constant 0 : index
    %c0_2 = arith.constant 0 : index
    %10 = vector.load %arg2[%c0_1, %c0_2] : memref<512x128xf32, #tpu.memory_space<vmem>>, vector<512x128xf32>
    %cst = arith.constant dense<0.000000e+00> : vector<16x128xf32>
    %11 = tpu.matmul %9, %10, %cst {dimension_numbers = #tpu.dot_dimension_numbers<[1], [0], [0], [1], [0, 0, 1, 1], [], []>} : vector<16x512xf32>, vector<512x128xf32>, vector<16x128xf32> -> vector<16x128xf32>
    %cst_3 = arith.constant 11.3137083 : f32
    %12 = vector.broadcast %cst_3 : f32 to vector<16x128xf32>
    %13 = arith.mulf %11, %12 : vector<16x128xf32>
    %c0_4 = arith.constant 0 : index
    %c0_5 = arith.constant 0 : index
    %14 = vector.load %arg3[%c0_4, %c0_5] : memref<16x128xf32, #tpu.memory_space<vmem>>, vector<16x128xf32>
    tpu.vector_store %arg3[%c0_4, %c0_5], %13 {strides = array<i32>} : memref<16x128xf32, #tpu.memory_space<vmem>>, vector<16x128xf32>,
    return
  }
  func.func @transform_0(%arg0: i32) -> (i32, i32) {
    %c0_i32 = arith.constant 0 : i32
    %c0_i32_0 = arith.constant 0 : i32
    return %arg0, %c0_i32 : i32, i32
  }
  func.func @transform_1(%arg0: i32) -> (i32, i32) {
    %c0_i32 = arith.constant 0 : i32
    %c0_i32_0 = arith.constant 0 : i32
    %c0_i32_1 = arith.constant 0 : i32
    return %c0_i32, %c0_i32_0 : i32, i32
  }
  func.func @transform_2(%arg0: i32) -> (i32, i32) {
    %c0_i32 = arith.constant 0 : i32
    %c0_i32_0 = arith.constant 0 : i32
    return %arg0, %c0_i32 : i32, i32
  }
}

</mosaic_0001>

<llo_original>
// kernel: tpu_custom_call.1
$region0: #{tpu_custom_call.1}
  #allocation0 [shape = 'u32[]', space=smem, size = 0x4, offset = 0x4, fixed_abs, tag = 'smem constant byte address 0x4 - core index']
  #allocation1 [shape = 'u32[72,128]{1,0:T(1,128)}', space=vmem, size = 0x9000, scoped, tag = 'internal scratch']
  %s0 = inlined_call_operand.vmem [shape: s32[16,1], index: 0, kind: input, shape index: {}]
  %s1 = inlined_call_operand.hbm [shape: f32[512,128], index: 1, kind: input, shape index: {}]
  %s2 = inlined_call_operand.hbm [shape: f32[16,128], index: 2, kind: output, shape index: {}]
  %s3 = sld [smem:[#allocation0]]
  $region22: #{tpu_custom_call.1} parent=0
    _
  %s5 = ssub.s32 1, %s3
  %s6 = scalar_select 0, %s5, %s3
  $region1: #{tpu_custom_call.1} parent=0
    #allocation2 [shape = 'u8[262144]{0}', space=vmem, size = 0x40000, scoped, tag = 'input window, operand 1, single buffered']
    #allocation3 [shape = 's32[1]{0}', space=sflag, size = 0x4, scoped, tag = 'scoped memory for tpu_custom_call.1']
    #allocation4 [shape = 's32[1]{0}', space=sflag, size = 0x4, scoped, tag = 'scoped memory for tpu_custom_call.1']
    #allocation5 [shape = 'u8[8192]{0}', space=vmem, size = 0x2000, scoped, tag = 'output window, operand 0, single buffered']
    %7 = vsyncpa [#allocation3], 0
    %8 = vsyncpa [#allocation4], 0
    // Predicated region
    $region2: #{tpu_custom_call.1} parent=1 // pred_check
      _
    $region3: #{tpu_custom_call.1} parent=1 // pred_check_branch
      %10 = sbr.rel (0) target = $region5
    $region4: #{tpu_custom_call.1} parent=1 // pred_region
      _
    $region5: #{tpu_custom_call.1} parent=1 // pred_fallthru
      _
    // Predicated region
    $region6: #{tpu_custom_call.1} parent=1 // pred_check
      _
    $region7: #{tpu_custom_call.1} parent=1 // pred_check_branch
      %12 = sbr.rel (0) target = $region9
    $region8: #{tpu_custom_call.1} parent=1 // pred_region
      %14 = vsyncadd [#allocation3], 0
      %s15 = sshll.u32 %s1, 4
      %s16 = int_to_ptr.hbm [resolvable:$true] %s15
      %s17 = sshll.u32 [#allocation2], 4
      %s18 = int_to_ptr.vmem [resolvable:$true] %s17
      %23 = dma.hbm_to_vmem [thread:$0]  %s16, 8192, %s18, [#allocation3], 128, 128, 8
    $region9: #{tpu_custom_call.1} parent=1 // pred_fallthru
      _
    // Predicated region
    $region10: #{tpu_custom_call.1} parent=1 // pred_check
      _
    $region11: #{tpu_custom_call.1} parent=1 // pred_check_branch
      %25 = sbr.rel (0) target = $region13
    $region12: #{tpu_custom_call.1} parent=1 // pred_region
      %27 = dma.done [#allocation3], 8192
    $region13: #{tpu_custom_call.1} parent=1 // pred_fallthru
      _
    %v28 = vld [vmem:[%s0] sm:$0xff]
    %v29 = vld [vmem:[%s0 + $0x8] sm:$0xff]
    %vm30 = vcmp.gt.s32.totalorder %v28, 0
    %v31 = vsel %vm30, %v28, 0
    %vm32 = vcmp.gt.s32.totalorder %v29, 0
    %v33 = vsel %vm32, %v29, 0
    %vm34 = vcmp.lt.s32.totalorder %v31, 511
    %v35 = vsel %vm34, %v31, 511
    %vm36 = vcmp.lt.s32.totalorder %v33, 511
    %v37 = vsel %vm36, %v33, 511
    %v38 = vlaneseq
    %v39 = vand.u32 %v38, 127
    %v40 = vadd.s32 %v39, 128
    %v41 = vadd.s32 %v39, 256
    %v42 = vadd.s32 %v39, 384
    %43 = vset.pattern.permute.xlu0 0
    %44 = vperm.xlu0 %43, %v35
    %v45 = vpop.permute.xlu0 %44
    %46 = vset.pattern.permute.xlu0 0
    %47 = vperm.xlu0 %46, %v37
    %v48 = vpop.permute.xlu0 %47
    %vm49 = vcmp.eq.s32.totalorder %v39, %v45
    %vm50 = vcmp.eq.s32.totalorder %v40, %v45
    %vm51 = vcmp.eq.s32.totalorder %v41, %v45
    %vm52 = vcmp.eq.s32.totalorder %v42, %v45
    %vm53 = vcmp.eq.s32.totalorder %v39, %v48
    %vm54 = vcmp.eq.s32.totalorder %v40, %v48
    %vm55 = vcmp.eq.s32.totalorder %v41, %v48
    %vm56 = vcmp.eq.s32.totalorder %v42, %v48
    %v57 = vsel %vm49, 1, 0
    %v58 = vsel %vm50, 1, 0
    %v59 = vsel %vm51, 1, 0
    %v60 = vsel %vm52, 1, 0
    %v61 = vsel %vm53, 1, 0
    %v62 = vsel %vm54, 1, 0
    %v63 = vsel %vm55, 1, 0
    %v64 = vsel %vm56, 1, 0
    %v65 = vcvt.s32.f32 %v57
    %v66 = vcvt.s32.f32 %v58
    %v67 = vcvt.s32.f32 %v59
    %v68 = vcvt.s32.f32 %v60
    %v69 = vcvt.s32.f32 %v61
    %v70 = vcvt.s32.f32 %v62
    %v71 = vcvt.s32.f32 %v63
    %v72 = vcvt.s32.f32 %v64
    %v73 = vld [vmem:[#allocation2] sm:$0xff]
    %v74 = vld [vmem:[#allocation2 + $0x8] sm:$0xff]
    %v75 = vld [vmem:[#allocation2 + $0x10] sm:$0xff]
    %v76 = vld [vmem:[#allocation2 + $0x18] sm:$0xff]
    %v77 = vld [vmem:[#allocation2 + $0x20] sm:$0xff]
    %v78 = vld [vmem:[#allocation2 + $0x28] sm:$0xff]
    %v79 = vld [vmem:[#allocation2 + $0x30] sm:$0xff]
    %v80 = vld [vmem:[#allocation2 + $0x38] sm:$0xff]
    %v81 = vld [vmem:[#allocation2 + $0x40] sm:$0xff]
    %v82 = vld [vmem:[#allocation2 + $0x48] sm:$0xff]
    %v83 = vld [vmem:[#allocation2 + $0x50] sm:$0xff]
    %v84 = vld [vmem:[#allocation2 + $0x58] sm:$0xff]
    %v85 = vld [vmem:[#allocation2 + $0x60] sm:$0xff]
    %v86 = vld [vmem:[#allocation2 + $0x68] sm:$0xff]
    %v87 = vld [vmem:[#allocation2 + $0x70] sm:$0xff]
    %v88 = vld [vmem:[#allocation2 + $0x78] sm:$0xff]
    %v89 = vld [vmem:[#allocation2 + $0x80] sm:$0xff]
    %v90 = vld [vmem:[#allocation2 + $0x88] sm:$0xff]
    %v91 = vld [vmem:[#allocation2 + $0x90] sm:$0xff]
    %v92 = vld [vmem:[#allocation2 + $0x98] sm:$0xff]
    %v93 = vld [vmem:[#allocation2 + $0xa0] sm:$0xff]
    %v94 = vld [vmem:[#allocation2 + $0xa8] sm:$0xff]
    %v95 = vld [vmem:[#allocation2 + $0xb0] sm:$0xff]
    %v96 = vld [vmem:[#allocation2 + $0xb8] sm:$0xff]
    %v97 = vld [vmem:[#allocation2 + $0xc0] sm:$0xff]
    %v98 = vld [vmem:[#allocation2 + $0xc8] sm:$0xff]
    %v99 = vld [vmem:[#allocation2 + $0xd0] sm:$0xff]
    %v100 = vld [vmem:[#allocation2 + $0xd8] sm:$0xff]
    %v101 = vld [vmem:[#allocation2 + $0xe0] sm:$0xff]
    %v102 = vld [vmem:[#allocation2 + $0xe8] sm:$0xff]
    %v103 = vld [vmem:[#allocation2 + $0xf0] sm:$0xff]
    %v104 = vld [vmem:[#allocation2 + $0xf8] sm:$0xff]
    %v105 = vld [vmem:[#allocation2 + $0x100] sm:$0xff]
    %v106 = vld [vmem:[#allocation2 + $0x108] sm:$0xff]
    %v107 = vld [vmem:[#allocation2 + $0x110] sm:$0xff]
    %v108 = vld [vmem:[#allocation2 + $0x118] sm:$0xff]
    %v109 = vld [vmem:[#allocation2 + $0x120] sm:$0xff]
    %v110 = vld [vmem:[#allocation2 + $0x128] sm:$0xff]
    %v111 = vld [vmem:[#allocation2 + $0x130] sm:$0xff]
    %v112 = vld [vmem:[#allocation2 + $0x138] sm:$0xff]
    %v113 = vld [vmem:[#allocation2 + $0x140] sm:$0xff]
    %v114 = vld [vmem:[#allocation2 + $0x148] sm:$0xff]
    %v115 = vld [vmem:[#allocation2 + $0x150] sm:$0xff]
    %v116 = vld [vmem:[#allocation2 + $0x158] sm:$0xff]
    %v117 = vld [vmem:[#allocation2 + $0x160] sm:$0xff]
    %v118 = vld [vmem:[#allocation2 + $0x168] sm:$0xff]
    %v119 = vld [vmem:[#allocation2 + $0x170] sm:$0xff]
    %v120 = vld [vmem:[#allocation2 + $0x178] sm:$0xff]
    %v121 = vld [vmem:[#allocation2 + $0x180] sm:$0xff]
    %v122 = vld [vmem:[#allocation2 + $0x188] sm:$0xff]
    %v123 = vld [vmem:[#allocation2 + $0x190] sm:$0xff]
    %v124 = vld [vmem:[#allocation2 + $0x198] sm:$0xff]
    %v125 = vld [vmem:[#allocation2 + $0x1a0] sm:$0xff]
    %v126 = vld [vmem:[#allocation2 + $0x1a8] sm:$0xff]
    %v127 = vld [vmem:[#allocation2 + $0x1b0] sm:$0xff]
    %v128 = vld [vmem:[#allocation2 + $0x1b8] sm:$0xff]
    %v129 = vld [vmem:[#allocation2 + $0x1c0] sm:$0xff]
    %v130 = vld [vmem:[#allocation2 + $0x1c8] sm:$0xff]
    %v131 = vld [vmem:[#allocation2 + $0x1d0] sm:$0xff]
    %v132 = vld [vmem:[#allocation2 + $0x1d8] sm:$0xff]
    %v133 = vld [vmem:[#allocation2 + $0x1e0] sm:$0xff]
    %v134 = vld [vmem:[#allocation2 + $0x1e8] sm:$0xff]
    %v135 = vld [vmem:[#allocation2 + $0x1f0] sm:$0xff]
    %v136 = vld [vmem:[#allocation2 + $0x1f8] sm:$0xff]
    %137 = vmatpush.msra.mxu0 %v88
    %138 = vmatpush.msra.mxu0 %v87
    %139 = vmatpush.msra.mxu0 %v86
    %140 = vmatpush.msra.mxu0 %v85
    %141 = vmatpush.msra.mxu0 %v84
    %142 = vmatpush.msra.mxu0 %v83
    %143 = vmatpush.msra.mxu0 %v82
    %144 = vmatpush.msra.mxu0 %v81
    %145 = vmatpush.msra.mxu0 %v80
    %146 = vmatpush.msra.mxu0 %v79
    %147 = vmatpush.msra.mxu0 %v78
    %148 = vmatpush.msra.mxu0 %v77
    %149 = vmatpush.msra.mxu0 %v76
    %150 = vmatpush.msra.mxu0 %v75
    %151 = vmatpush.msra.mxu0 %v74
    %152 = vmatpush.msra.mxu0 %v73
    %153 = vmatmul.f32.gmra.mxu0 %v65
    %v154 = vpop.f32.mrf.mxu0
    %v155 = vadd.f32 0.0, %v154
    %156 = vmatmul.f32.gmra.mxu0 %v69
    %v157 = vpop.f32.mrf.mxu0
    %v158 = vadd.f32 0.0, %v157
    %159 = vdwg.mxu0
    %160 = vmatpush.msra.mxu0 %v104
    %161 = vmatpush.msra.mxu0 %v103
    %162 = vmatpush.msra.mxu0 %v102
    %163 = vmatpush.msra.mxu0 %v101
    %164 = vmatpush.msra.mxu0 %v100
    %165 = vmatpush.msra.mxu0 %v99
    %166 = vmatpush.msra.mxu0 %v98
    %167 = vmatpush.msra.mxu0 %v97
    %168 = vmatpush.msra.mxu0 %v96
    %169 = vmatpush.msra.mxu0 %v95
    %170 = vmatpush.msra.mxu0 %v94
    %171 = vmatpush.msra.mxu0 %v93
    %172 = vmatpush.msra.mxu0 %v92
    %173 = vmatpush.msra.mxu0 %v91
    %174 = vmatpush.msra.mxu0 %v90
    %175 = vmatpush.msra.mxu0 %v89
    %176 = vmatmul.f32.gmra.mxu0 %v66
    %v177 = vpop.f32.mrf.mxu0
    %v178 = vadd.f32 %v155, %v177
    %179 = vmatmul.f32.gmra.mxu0 %v70
    %v180 = vpop.f32.mrf.mxu0
    %v181 = vadd.f32 %v158, %v180
    %182 = vdwg.mxu0
    %183 = vmatpush.msra.mxu0 %v120
    %184 = vmatpush.msra.mxu0 %v119
    %185 = vmatpush.msra.mxu0 %v118
    %186 = vmatpush.msra.mxu0 %v117
    %187 = vmatpush.msra.mxu0 %v116
    %188 = vmatpush.msra.mxu0 %v115
    %189 = vmatpush.msra.mxu0 %v114
    %190 = vmatpush.msra.mxu0 %v113
    %191 = vmatpush.msra.mxu0 %v112
    %192 = vmatpush.msra.mxu0 %v111
    %193 = vmatpush.msra.mxu0 %v110
    %194 = vmatpush.msra.mxu0 %v109
    %195 = vmatpush.msra.mxu0 %v108
    %196 = vmatpush.msra.mxu0 %v107
    %197 = vmatpush.msra.mxu0 %v106
    %198 = vmatpush.msra.mxu0 %v105
    %199 = vmatmul.f32.gmra.mxu0 %v67
    %v200 = vpop.f32.mrf.mxu0
    %v201 = vadd.f32 %v178, %v200
    %202 = vmatmul.f32.gmra.mxu0 %v71
    %v203 = vpop.f32.mrf.mxu0
    %v204 = vadd.f32 %v181, %v203
    %205 = vdwg.mxu0
    %206 = vmatpush.msra.mxu0 %v136
    %207 = vmatpush.msra.mxu0 %v135
    %208 = vmatpush.msra.mxu0 %v134
    %209 = vmatpush.msra.mxu0 %v133
    %210 = vmatpush.msra.mxu0 %v132
    %211 = vmatpush.msra.mxu0 %v131
    %212 = vmatpush.msra.mxu0 %v130
    %213 = vmatpush.msra.mxu0 %v129
    %214 = vmatpush.msra.mxu0 %v128
    %215 = vmatpush.msra.mxu0 %v127
    %216 = vmatpush.msra.mxu0 %v126
    %217 = vmatpush.msra.mxu0 %v125
    %218 = vmatpush.msra.mxu0 %v124
    %219 = vmatpush.msra.mxu0 %v123
    %220 = vmatpush.msra.mxu0 %v122
    %221 = vmatpush.msra.mxu0 %v121
    %222 = vmatmul.f32.gmra.mxu0 %v68
    %v223 = vpop.f32.mrf.mxu0
    %v224 = vadd.f32 %v201, %v223
    %225 = vmatmul.f32.gmra.mxu0 %v72
    %v226 = vpop.f32.mrf.mxu0
    %v227 = vadd.f32 %v204, %v226
    %228 = vdwg.mxu0
    %v229 = vmul.f32 %v224, 11.313708
    %v230 = vmul.f32 %v227, 11.313708
    %231 = vst [vmem:[#allocation5] sm:$0xff] %v229
    %232 = vst [vmem:[#allocation5 + $0x8] sm:$0xff] %v230
    // Predicated region
    $region14: #{tpu_custom_call.1} parent=1 // pred_check
      _
    $region15: #{tpu_custom_call.1} parent=1 // pred_check_branch
      %234 = sbr.rel (0) target = $region17
    $region16: #{tpu_custom_call.1} parent=1 // pred_region
      %236 = vsyncadd [#allocation4], 0
      %s237 = sshll.u32 [#allocation5], 4
      %s238 = int_to_ptr.vmem [resolvable:$true] %s237
      %s239 = sshll.u32 %s2, 4
      %s240 = int_to_ptr.hbm [resolvable:$true] %s239
      %245 = dma.vmem_to_hbm [thread:$0]  %s238, 256, %s240, [#allocation4], 128, 128, 8
    $region17: #{tpu_custom_call.1} parent=1 // pred_fallthru
      _
    // Predicated region
    $region18: #{tpu_custom_call.1} parent=1 // pred_check
      _
    $region19: #{tpu_custom_call.1} parent=1 // pred_check_branch
      %247 = sbr.rel (0) target = $region21
    $region20: #{tpu_custom_call.1} parent=1 // pred_region
      %249 = dma.done [#allocation4], 256
    $region21: #{tpu_custom_call.1} parent=1 // pred_fallthru
      _
    %250 = vsyncpa [#allocation3], 1
    %251 = vsyncpa [#allocation4], 1

</llo_original>
